<compile_context>
chip_gen: v6e
topology: v6e:2x2x1
jax: 0.10.0
libtpu: 0.0.40
codegen_flags: <defaults>
</compile_context>

<pallas_src>
import jax
import jax.numpy as jnp
from jax.experimental import pallas as pl
from jax.experimental.pallas import tpu as pltpu


BN_EPS = 1e-5


# ----------------------------------------------------------------------------
# Pallas kernel: conv1 -> conv2 -> (folded fc ∘ gc2) -> gc2 graph add -> A^T
#                -> ReLU -> final_mapping        (per BT tile)
# ----------------------------------------------------------------------------
def _gcn_visual_kernel(f_ref, w1f_ref, s1_ref, w2f_ref, s2_ref,
                       vtile_ref, sel_ref, t_ref, at_ref, bg2_ref,
                       fmw_ref, fmb_ref, o_ref):
    f32 = jnp.float32

    # ---- vis_encoder: 1x1 conv + BN + ReLU, x2 (BN folded into weights) -----
    # f_ref rows are ordered b*HW + s (b-major), channels last.
    h1 = jnp.maximum(
        jnp.dot(f_ref[...], w1f_ref[...], preferred_element_type=f32)
        + s1_ref[...], 0.0)                                   # (tile*HW, cmid)
    h1 = h1.astype(w2f_ref.dtype)                             # no-op in f32
    h2 = jnp.maximum(
        jnp.dot(h1, w2f_ref[...], preferred_element_type=f32)
        + s2_ref[...], 0.0)                                   # (tile*HW, cout)

    # ---- folded fc ∘ gc2(enc-half):  u[b] = sum_{s,c} h2[b*HW+s, c]*g[c, s] --
    # vtile[b*HW+s, c] = g[c, s]; sel is the per-frame row-block indicator.
    q = jnp.sum(h2 * vtile_ref[...], axis=1, keepdims=True)   # (tile*HW, 1)
    u = jnp.dot(sel_ref[...], q, preferred_element_type=f32)  # (tile, 1)

    # ---- gc2 (rank-1 over the concat) + ReLU + final_mapping -----------------
    # t_ref already contains the frame-independent graph half and fc_b @ w2e.
    s_gc2 = u + t_ref[...]                                    # (tile, n)
    out2 = jnp.maximum(
        jnp.dot(s_gc2, at_ref[...], preferred_element_type=f32) + bg2_ref[...],
        0.0)                                                  # (tile, n)
    o_ref[...] = (jnp.dot(out2, fmw_ref[...], preferred_element_type=f32)
                  + fmb_ref[...]).astype(o_ref.dtype)         # (tile, nout)


# ----------------------------------------------------------------------------
# Wrapper: setup-time parameter folds + gridded pallas_call
# ----------------------------------------------------------------------------
def normalize_adj_dense(adj):
    """Dense re-implementation of normalize_adj (D^-1/2 A D^-1/2, transposed)."""
    rowsum = adj.sum(axis=1)
    d_inv_sqrt = jnp.where(rowsum > 0, rowsum ** -0.5, 0.0)
    return ((adj * d_inv_sqrt[None, :]).T) * d_inv_sqrt[None, :]


def gcn_visual_forward(frames, p, *, tile_bt=None, compute_dtype=jnp.float32):
    """Fused Pallas forward pass of GCNVisual.  frames: (B, T, C, H, W) NCHW.

    compute_dtype: jnp.bfloat16 on v6e/v7x halves slab/weight DMA bytes
    (accumulation stays f32); keep f32 on v5e elementwise-heavy paths or when
    comparing tightly against an f32 reference.
    """
    B, T, C, H, W = frames.shape
    BT, HW = B * T, H * W
    n = p["A"].shape[0]
    dframe = p["fc_w"].shape[0]
    nout = p["fm_w"].shape[0]
    cmid = p["conv1_w"].shape[0]
    cout = p["conv2_w"].shape[0]

    # BT tile: whole batch at demo shapes; at ALFRED shapes pick a multiple of
    # 8 dividing BT that gives >=512 slab rows per grid step (half that on v7x,
    # which has 64 MiB VMEM).
    if tile_bt is None:
        tile_bt = BT
    assert BT % tile_bt == 0
    num_tiles = BT // tile_bt
    f32 = jnp.float32

    # ---- setup-time parameter folds (parameter-only; cacheable) -------------
    # BatchNorm folded into the 1x1 conv weights.
    scale1 = p["bn1_g"] * jax.lax.rsqrt(p["bn1_v"] + BN_EPS)
    w1f = (p["conv1_w"] * scale1[:, None]).T.astype(compute_dtype)   # (C, cmid)
    s1 = ((p["conv1_b"] - p["bn1_m"]) * scale1 + p["bn1_b"])[None, :]
    scale2 = p["bn2_g"] * jax.lax.rsqrt(p["bn2_v"] + BN_EPS)
    w2f = (p["conv2_w"] * scale2[:, None]).T.astype(compute_dtype)   # (cmid, cout)
    s2 = ((p["conv2_b"] - p["bn2_m"]) * scale2 + p["bn2_b"])[None, :]

    # fc ∘ gc2(enc-half) fold: enc only feeds u = enc @ w2e.
    w2e = p["w_gc2"][:dframe, 0]                                     # (dframe,)
    gk = w2e @ p["fc_w"]                                             # (cout*HW,), NCHW flatten order
    vmat = gk.reshape(cout, HW).T                                    # (HW, cout): vmat[s, c] = g[c, s]
    vtile = jnp.tile(vmat, (tile_bt, 1)).astype(f32)                 # (tile*HW, cout)
    sel = jnp.kron(jnp.eye(tile_bt, dtype=f32),
                   jnp.ones((1, HW), f32))                           # (tile, tile*HW)
    c0 = p["fc_b"] @ w2e                                             # scalar: fc_b @ w2e

    # Frame-independent graph branch (gc1 + ReLU + graph half of gc2), hoisted.
    # Dropout is identity in eval mode.
    x1 = jax.nn.relu(p["A"] @ (p["we"] @ p["w_gc1"]) + p["b_gc1"])   # (n, nhid)
    t_row = (x1 @ p["w_gc2"][dframe:, :]).T + c0                     # (1, n)

    a_t = p["A"].T
    b_gc2 = p["b_gc2"].reshape(1, 1)
    fm_wt = p["fm_w"].T                                              # (n, nout)
    fm_b = p["fm_b"][None, :]

    # frames (B,T,C,H,W) NCHW -> b-major channels-last slab, rows = b*HW + s.
    f_slab = (frames.reshape(BT, C, HW).transpose(0, 2, 1)
              .reshape(BT * HW, C).astype(compute_dtype))

    inputs = (f_slab, w1f, s1, w2f, s2, vtile, sel, t_row, a_t, b_gc2,
              fm_wt, fm_b)

    rows = tile_bt * HW
    resident = lambda shape: pl.BlockSpec(shape, lambda i: (0, 0))
    in_specs = [
        pl.BlockSpec((rows, C), lambda i: (i, 0)),   # streamed per BT tile
        resident(w1f.shape), resident(s1.shape),
        resident(w2f.shape), resident(s2.shape),
        resident(vtile.shape), resident(sel.shape),
        resident(t_row.shape), resident(a_t.shape), resident(b_gc2.shape),
        resident(fm_wt.shape), resident(fm_b.shape),
    ]
    out_spec = pl.BlockSpec((tile_bt, nout), lambda i: (i, 0))

    flops = 2 * BT * (HW * (C * cmid + cmid * cout + 2 * cout)
                      + n * (n + nout + 1))
    bytes_accessed = int(sum(x.size * x.dtype.itemsize for x in inputs)
                         + BT * nout * 4)

    out = pl.pallas_call(
        _gcn_visual_kernel,
        grid=(num_tiles,),
        in_specs=in_specs,
        out_specs=out_spec,
        out_shape=jax.ShapeDtypeStruct((BT, nout), f32),
        compiler_params=pltpu.CompilerParams(
            dimension_semantics=("parallel",),
            # At ALFRED shapes set vmem_limit_bytes explicitly (v7x: 64 MiB
            # physical / 32 MiB default scoped; v5e: 16 MiB default scoped).
        ),
        cost_estimate=pl.CostEstimate(flops=flops, transcendentals=0,
                                      bytes_accessed=bytes_accessed),
    )(*inputs)
    return out.reshape(B, T, nout)


# ----------------------------------------------------------------------------
# Plain-JAX reference (faithful restatement of the PyTorch forward)
# ----------------------------------------------------------------------------
def reference_forward(frames, p):
    B, T, C, H, W = frames.shape
    n = p["A"].shape[0]
    x = jax.nn.relu(p["A"] @ (p["we"] @ p["w_gc1"]) + p["b_gc1"])    # (n, nhid)
    f = frames.reshape(B * T, C, H, W)
    y = jnp.einsum("bchw,oc->bohw", f, p["conv1_w"]) + p["conv1_b"][None, :, None, None]
    y = jax.nn.relu((y - p["bn1_m"][None, :, None, None])
                    / jnp.sqrt(p["bn1_v"] + BN_EPS)[None, :, None, None]
                    * p["bn1_g"][None, :, None, None] + p["bn1_b"][None, :, None, None])
    y = jnp.einsum("bchw,oc->bohw", y, p["conv2_w"]) + p["conv2_b"][None, :, None, None]
    y = jax.nn.relu((y - p["bn2_m"][None, :, None, None])
                    / jnp.sqrt(p["bn2_v"] + BN_EPS)[None, :, None, None]
                    * p["bn2_g"][None, :, None, None] + p["bn2_b"][None, :, None, None])
    enc = y.reshape(y.shape[0], -1) @ p["fc_w"].T + p["fc_b"]        # (BT, dframe)
    enc_rep = jnp.repeat(enc[:, None, :], n, axis=1)
    x_rep = jnp.broadcast_to(x[None], (enc.shape[0], n, x.shape[1]))
    cat = jnp.concatenate([enc_rep, x_rep], axis=-1)                 # (BT, n, F2)
    s = cat @ p["w_gc2"]                                             # (BT, n, 1)
    out2 = jax.nn.relu(jnp.einsum("ij,bjk->bik", p["A"], s) + p["b_gc2"])
    out2 = out2.reshape(B, T, n)
    return out2 @ p["fm_w"].T + p["fm_b"]


# ----------------------------------------------------------------------------
if __name__ == "__main__":
    # Small shapes consistent with the module (108 objects -> 16, 300-d -> 32,
    # nhid=128, dframe=128, ResNet feature maps (512,7,7) -> (32,4,4)).
    N_NODES, D_WE, NHID, DFRAME, NOUT = 16, 32, 128, 128, 8
    B, T, C_IN, H, W = 2, 2, 32, 4, 4
    C_MID, C_OUT = 16, 8
    FLAT = C_OUT * H * W                       # 128
    F2 = NHID + DFRAME                         # gc2 in_features

    key = jax.random.PRNGKey(0)
    ks = jax.random.split(key, 16)

    def unif(k, shape, fan_in):
        bound = 1.0 / jnp.sqrt(jnp.float32(fan_in))
        return jax.random.uniform(k, shape, jnp.float32, -bound, bound)

    # adjacency (deterministic symmetric binary graph with self-loops)
    bits = (jax.random.uniform(ks[0], (N_NODES, N_NODES)) < 0.3).astype(jnp.float32)
    a_raw = jnp.clip(jnp.maximum(bits, bits.T) + jnp.eye(N_NODES), 0.0, 1.0)

    params = {
        "A": normalize_adj_dense(a_raw),
        "we": jax.random.normal(ks[1], (N_NODES, D_WE), jnp.float32),
        # gc1: GraphConvolution(D_WE -> NHID)
        "w_gc1": unif(ks[2], (D_WE, NHID), D_WE),
        "b_gc1": unif(ks[3], (1, NHID), D_WE),
        # vis_encoder
        "conv1_w": unif(ks[4], (C_MID, C_IN), C_IN),
        "conv1_b": unif(ks[5], (C_MID,), C_IN),
        "bn1_g": jnp.ones((C_MID,), jnp.float32),
        "bn1_b": jnp.zeros((C_MID,), jnp.float32),
        "bn1_m": jnp.zeros((C_MID,), jnp.float32),
        "bn1_v": jnp.ones((C_MID,), jnp.float32),
        "conv2_w": unif(ks[6], (C_OUT, C_MID), C_MID),
        "conv2_b": unif(ks[7], (C_OUT,), C_MID),
        "bn2_g": jnp.ones((C_OUT,), jnp.float32),
        "bn2_b": jnp.zeros((C_OUT,), jnp.float32),
        "bn2_m": jnp.zeros((C_OUT,), jnp.float32),
        "bn2_v": jnp.ones((C_OUT,), jnp.float32),
        "fc_w": unif(ks[8], (DFRAME, FLAT), FLAT),
        "fc_b": unif(ks[9], (DFRAME,), FLAT),
        # gc2: GraphConvolution(NHID + DFRAME -> 1)
        "w_gc2": unif(ks[10], (F2, 1), F2),
        "b_gc2": unif(ks[11], (1, 1), F2),
        # final_mapping: Linear(N_NODES -> NOUT)
        "fm_w": unif(ks[12], (NOUT, N_NODES), N_NODES),
        "fm_b": unif(ks[13], (NOUT,), N_NODES),
    }

    frames = jax.random.normal(ks[14], (B, T, C_IN, H, W), jnp.float32)

    fwd = jax.jit(gcn_visual_forward)
    out = jax.block_until_ready(fwd(frames, params))
    ref = jax.block_until_ready(reference_forward(frames, params))

    assert out.shape == (B, T, NOUT), out.shape
    max_err = float(jnp.max(jnp.abs(out - ref)))
    assert max_err < 1e-2, f"mismatch vs reference: {max_err}"
    print("KERNEL_OK")
</pallas_src>

<mosaic_0001>
module attributes {stable_mosaic.version = 11 : i64} {
  func.func @_gcn_visual_kernel(%arg0: i32, %arg1: memref<64x32xf32, #tpu.memory_space<vmem>>, %arg2: memref<32x16xf32, #tpu.memory_space<vmem>>, %arg3: memref<1x16xf32, #tpu.memory_space<vmem>>, %arg4: memref<16x8xf32, #tpu.memory_space<vmem>>, %arg5: memref<1x8xf32, #tpu.memory_space<vmem>>, %arg6: memref<64x8xf32, #tpu.memory_space<vmem>>, %arg7: memref<4x64xf32, #tpu.memory_space<vmem>>, %arg8: memref<1x16xf32, #tpu.memory_space<vmem>>, %arg9: memref<16x16xf32, #tpu.memory_space<vmem>>, %arg10: memref<1x1xf32, #tpu.memory_space<vmem>>, %arg11: memref<16x8xf32, #tpu.memory_space<vmem>>, %arg12: memref<1x8xf32, #tpu.memory_space<vmem>>, %arg13: memref<4x8xf32, #tpu.memory_space<vmem>>) attributes {dimension_semantics = [#tpu.dimension_semantics<parallel>], iteration_bounds = array<i64: 1>, scalar_prefetch = 0 : i64, scratch_operands = 0 : i64, tpu.core_type = #tpu.core_type<tc>, window_params = [{transform_indices = @transform_0, window_bounds = array<i64: 64, 32>}, {pipeline_mode = #tpu.pipeline_mode<synchronous>, transform_indices = @transform_1, window_bounds = array<i64: 32, 16>}, {pipeline_mode = #tpu.pipeline_mode<synchronous>, transform_indices = @transform_2, window_bounds = array<i64: 1, 16>}, {pipeline_mode = #tpu.pipeline_mode<synchronous>, transform_indices = @transform_3, window_bounds = array<i64: 16, 8>}, {pipeline_mode = #tpu.pipeline_mode<synchronous>, transform_indices = @transform_4, window_bounds = array<i64: 1, 8>}, {pipeline_mode = #tpu.pipeline_mode<synchronous>, transform_indices = @transform_5, window_bounds = array<i64: 64, 8>}, {pipeline_mode = #tpu.pipeline_mode<synchronous>, transform_indices = @transform_6, window_bounds = array<i64: 4, 64>}, {pipeline_mode = #tpu.pipeline_mode<synchronous>, transform_indices = @transform_7, window_bounds = array<i64: 1, 16>}, {pipeline_mode = #tpu.pipeline_mode<synchronous>, transform_indices = @transform_8, window_bounds = array<i64: 16, 16>}, {pipeline_mode = #tpu.pipeline_mode<synchronous>, transform_indices = @transform_9, window_bounds = array<i64: 1, 1>}, {pipeline_mode = #tpu.pipeline_mode<synchronous>, transform_indices = @transform_10, window_bounds = array<i64: 16, 8>}, {pipeline_mode = #tpu.pipeline_mode<synchronous>, transform_indices = @transform_11, window_bounds = array<i64: 1, 8>}, {transform_indices = @transform_12, window_bounds = array<i64: 4, 8>}]} {
    %c0 = arith.constant 0 : index
    %c0_0 = arith.constant 0 : index
    %0 = vector.load %arg1[%c0, %c0_0] : memref<64x32xf32, #tpu.memory_space<vmem>>, vector<64x32xf32>
    %c0_1 = arith.constant 0 : index
    %c0_2 = arith.constant 0 : index
    %1 = vector.load %arg2[%c0_1, %c0_2] : memref<32x16xf32, #tpu.memory_space<vmem>>, vector<32x16xf32>
    %cst = arith.constant dense<0.000000e+00> : vector<64x16xf32>
    %2 = tpu.matmul %0, %1, %cst {dimension_numbers = #tpu.dot_dimension_numbers<[1], [0], [0], [1], [0, 0, 1, 1], [], []>} : vector<64x32xf32>, vector<32x16xf32>, vector<64x16xf32> -> vector<64x16xf32>
    %c0_3 = arith.constant 0 : index
    %c0_4 = arith.constant 0 : index
    %3 = vector.load %arg3[%c0_3, %c0_4] : memref<1x16xf32, #tpu.memory_space<vmem>>, vector<1x16xf32>
    %4 = vector.broadcast %3 : vector<1x16xf32> to vector<64x16xf32>
    %5 = arith.addf %2, %4 : vector<64x16xf32>
    %cst_5 = arith.constant 0.000000e+00 : f32
    %6 = vector.broadcast %cst_5 : f32 to vector<64x16xf32>
    %7 = arith.maximumf %5, %6 : vector<64x16xf32>
    %c0_6 = arith.constant 0 : index
    %c0_7 = arith.constant 0 : index
    %8 = vector.load %arg4[%c0_6, %c0_7] : memref<16x8xf32, #tpu.memory_space<vmem>>, vector<16x8xf32>
    %cst_8 = arith.constant dense<0.000000e+00> : vector<64x8xf32>
    %9 = tpu.matmul %7, %8, %cst_8 {dimension_numbers = #tpu.dot_dimension_numbers<[1], [0], [0], [1], [0, 0, 1, 1], [], []>} : vector<64x16xf32>, vector<16x8xf32>, vector<64x8xf32> -> vector<64x8xf32>
    %c0_9 = arith.constant 0 : index
    %c0_10 = arith.constant 0 : index
    %10 = vector.load %arg5[%c0_9, %c0_10] : memref<1x8xf32, #tpu.memory_space<vmem>>, vector<1x8xf32>
    %11 = vector.broadcast %10 : vector<1x8xf32> to vector<64x8xf32>
    %12 = arith.addf %9, %11 : vector<64x8xf32>
    %cst_11 = arith.constant 0.000000e+00 : f32
    %13 = vector.broadcast %cst_11 : f32 to vector<64x8xf32>
    %14 = arith.maximumf %12, %13 : vector<64x8xf32>
    %c0_12 = arith.constant 0 : index
    %c0_13 = arith.constant 0 : index
    %15 = vector.load %arg6[%c0_12, %c0_13] : memref<64x8xf32, #tpu.memory_space<vmem>>, vector<64x8xf32>
    %16 = arith.mulf %14, %15 : vector<64x8xf32>
    %cst_14 = arith.constant dense<0.000000e+00> : vector<64xf32>
    %17 = vector.multi_reduction <add>, %16, %cst_14 [1] : vector<64x8xf32> to vector<64xf32>
    %18 = vector.shape_cast %17 : vector<64xf32> to vector<64x1xf32>
    %c0_15 = arith.constant 0 : index
    %c0_16 = arith.constant 0 : index
    %19 = vector.load %arg7[%c0_15, %c0_16] : memref<4x64xf32, #tpu.memory_space<vmem>>, vector<4x64xf32>
    %cst_17 = arith.constant dense<0.000000e+00> : vector<4x1xf32>
    %20 = tpu.matmul %19, %18, %cst_17 {dimension_numbers = #tpu.dot_dimension_numbers<[1], [0], [0], [1], [0, 0, 1, 1], [], []>} : vector<4x64xf32>, vector<64x1xf32>, vector<4x1xf32> -> vector<4x1xf32>
    %c0_18 = arith.constant 0 : index
    %c0_19 = arith.constant 0 : index
    %21 = vector.load %arg8[%c0_18, %c0_19] : memref<1x16xf32, #tpu.memory_space<vmem>>, vector<1x16xf32>
    %22 = vector.broadcast %20 : vector<4x1xf32> to vector<4x16xf32>
    %23 = vector.broadcast %21 : vector<1x16xf32> to vector<4x16xf32>
    %24 = arith.addf %22, %23 : vector<4x16xf32>
    %c0_20 = arith.constant 0 : index
    %c0_21 = arith.constant 0 : index
    %25 = vector.load %arg9[%c0_20, %c0_21] : memref<16x16xf32, #tpu.memory_space<vmem>>, vector<16x16xf32>
    %cst_22 = arith.constant dense<0.000000e+00> : vector<4x16xf32>
    %26 = tpu.matmul %24, %25, %cst_22 {dimension_numbers = #tpu.dot_dimension_numbers<[1], [0], [0], [1], [0, 0, 1, 1], [], []>} : vector<4x16xf32>, vector<16x16xf32>, vector<4x16xf32> -> vector<4x16xf32>
    %c0_23 = arith.constant 0 : index
    %c0_24 = arith.constant 0 : index
    %27 = vector.load %arg10[%c0_23, %c0_24] : memref<1x1xf32, #tpu.memory_space<vmem>>, vector<1x1xf32>
    %28 = vector.broadcast %27 : vector<1x1xf32> to vector<4x16xf32>
    %29 = arith.addf %26, %28 : vector<4x16xf32>
    %cst_25 = arith.constant 0.000000e+00 : f32
    %30 = vector.broadcast %cst_25 : f32 to vector<4x16xf32>
    %31 = arith.maximumf %29, %30 : vector<4x16xf32>
    %c0_26 = arith.constant 0 : index
    %c0_27 = arith.constant 0 : index
    %32 = vector.load %arg11[%c0_26, %c0_27] : memref<16x8xf32, #tpu.memory_space<vmem>>, vector<16x8xf32>
    %cst_28 = arith.constant dense<0.000000e+00> : vector<4x8xf32>
    %33 = tpu.matmul %31, %32, %cst_28 {dimension_numbers = #tpu.dot_dimension_numbers<[1], [0], [0], [1], [0, 0, 1, 1], [], []>} : vector<4x16xf32>, vector<16x8xf32>, vector<4x8xf32> -> vector<4x8xf32>
    %c0_29 = arith.constant 0 : index
    %c0_30 = arith.constant 0 : index
    %34 = vector.load %arg12[%c0_29, %c0_30] : memref<1x8xf32, #tpu.memory_space<vmem>>, vector<1x8xf32>
    %35 = vector.broadcast %34 : vector<1x8xf32> to vector<4x8xf32>
    %36 = arith.addf %33, %35 : vector<4x8xf32>
    %c0_31 = arith.constant 0 : index
    %c0_32 = arith.constant 0 : index
    %37 = vector.load %arg13[%c0_31, %c0_32] : memref<4x8xf32, #tpu.memory_space<vmem>>, vector<4x8xf32>
    tpu.vector_store %arg13[%c0_31, %c0_32], %36 {strides = array<i32>} : memref<4x8xf32, #tpu.memory_space<vmem>>, vector<4x8xf32>,
    return
  }
  func.func @transform_0(%arg0: i32) -> (i32, i32) {
    %c0_i32 = arith.constant 0 : i32
    %c0_i32_0 = arith.constant 0 : i32
    return %arg0, %c0_i32 : i32, i32
  }
  func.func @transform_1(%arg0: i32) -> (i32, i32) {
    %c0_i32 = arith.constant 0 : i32
    %c0_i32_0 = arith.constant 0 : i32
    %c0_i32_1 = arith.constant 0 : i32
    return %c0_i32, %c0_i32_0 : i32, i32
  }
  func.func @transform_2(%arg0: i32) -> (i32, i32) {
    %c0_i32 = arith.constant 0 : i32
    %c0_i32_0 = arith.constant 0 : i32
    %c0_i32_1 = arith.constant 0 : i32
    return %c0_i32, %c0_i32_0 : i32, i32
  }
  func.func @transform_3(%arg0: i32) -> (i32, i32) {
    %c0_i32 = arith.constant 0 : i32
    %c0_i32_0 = arith.constant 0 : i32
    %c0_i32_1 = arith.constant 0 : i32
    return %c0_i32, %c0_i32_0 : i32, i32
  }
  func.func @transform_4(%arg0: i32) -> (i32, i32) {
    %c0_i32 = arith.constant 0 : i32
    %c0_i32_0 = arith.constant 0 : i32
    %c0_i32_1 = arith.constant 0 : i32
    return %c0_i32, %c0_i32_0 : i32, i32
  }
  func.func @transform_5(%arg0: i32) -> (i32, i32) {
    %c0_i32 = arith.constant 0 : i32
    %c0_i32_0 = arith.constant 0 : i32
    %c0_i32_1 = arith.constant 0 : i32
    return %c0_i32, %c0_i32_0 : i32, i32
  }
  func.func @transform_6(%arg0: i32) -> (i32, i32) {
    %c0_i32 = arith.constant 0 : i32
    %c0_i32_0 = arith.constant 0 : i32
    %c0_i32_1 = arith.constant 0 : i32
    return %c0_i32, %c0_i32_0 : i32, i32
  }
  func.func @transform_7(%arg0: i32) -> (i32, i32) {
    %c0_i32 = arith.constant 0 : i32
    %c0_i32_0 = arith.constant 0 : i32
    %c0_i32_1 = arith.constant 0 : i32
    return %c0_i32, %c0_i32_0 : i32, i32
  }
  func.func @transform_8(%arg0: i32) -> (i32, i32) {
    %c0_i32 = arith.constant 0 : i32
    %c0_i32_0 = arith.constant 0 : i32
    %c0_i32_1 = arith.constant 0 : i32
    return %c0_i32, %c0_i32_0 : i32, i32
  }
  func.func @transform_9(%arg0: i32) -> (i32, i32) {
    %c0_i32 = arith.constant 0 : i32
    %c0_i32_0 = arith.constant 0 : i32
    %c0_i32_1 = arith.constant 0 : i32
    return %c0_i32, %c0_i32_0 : i32, i32
  }
  func.func @transform_10(%arg0: i32) -> (i32, i32) {
    %c0_i32 = arith.constant 0 : i32
    %c0_i32_0 = arith.constant 0 : i32
    %c0_i32_1 = arith.constant 0 : i32
    return %c0_i32, %c0_i32_0 : i32, i32
  }
  func.func @transform_11(%arg0: i32) -> (i32, i32) {
    %c0_i32 = arith.constant 0 : i32
    %c0_i32_0 = arith.constant 0 : i32
    %c0_i32_1 = arith.constant 0 : i32
    return %c0_i32, %c0_i32_0 : i32, i32
  }
  func.func @transform_12(%arg0: i32) -> (i32, i32) {
    %c0_i32 = arith.constant 0 : i32
    %c0_i32_0 = arith.constant 0 : i32
    return %arg0, %c0_i32 : i32, i32
  }
}

</mosaic_0001>

<llo_original>
// kernel: gcn_visual_forward.1
$region0: #{gcn_visual_forward.1}
  #allocation0 [shape = 'u32[]', space=smem, size = 0x4, offset = 0x4, fixed_abs, tag = 'smem constant byte address 0x4 - core index']
  #allocation1 [shape = 'u32[144,128]{1,0:T(1,128)}', space=vmem, size = 0x12000, scoped, tag = 'internal scratch']
  #allocation2 [shape = 'f32[1,1]{1,0:T(1,128)S(1)}', space=vmem, size = 0x200, scoped, tag = 'scoped memory for gcn_visual_forward.1']
  %s0 = inlined_call_operand.vmem [shape: f32[64,32], index: 0, kind: input, shape index: {}]
  %s1 = inlined_call_operand.vmem [shape: f32[32,16], index: 1, kind: input, shape index: {}]
  %s2 = inlined_call_operand.vmem [shape: f32[1,16], index: 2, kind: input, shape index: {}]
  %s3 = inlined_call_operand.vmem [shape: f32[16,8], index: 3, kind: input, shape index: {}]
  %s4 = inlined_call_operand.vmem [shape: f32[1,8], index: 4, kind: input, shape index: {}]
  %s5 = inlined_call_operand.vmem [shape: f32[64,8], index: 5, kind: input, shape index: {}]
  %s6 = inlined_call_operand.vmem [shape: f32[4,64], index: 6, kind: input, shape index: {}]
  %s7 = inlined_call_operand.vmem [shape: f32[1,16], index: 7, kind: input, shape index: {}]
  %s8 = inlined_call_operand.vmem [shape: f32[16,16], index: 8, kind: input, shape index: {}]
  %s9 = inlined_call_operand.<no memory space> [shape: f32[1,1], index: 9, kind: input, shape index: {}]
  %s10 = inlined_call_operand.vmem [shape: f32[16,8], index: 10, kind: input, shape index: {}]
  %s11 = inlined_call_operand.vmem [shape: f32[1,8], index: 11, kind: input, shape index: {}]
  %s12 = inlined_call_operand.hbm [shape: f32[4,8], index: 12, kind: output, shape index: {}]
  %s13 = sld [smem:[#allocation0]]
  $region58: #{gcn_visual_forward.1} parent=0
    _
  %s15 = ssub.s32 1, %s13
  %s16 = scalar_select 0, %s15, %s13
  %v17 = vstv %s9
  %18 = vst [vmem:[#allocation2] sm:$0x1] %v17
  $region1: #{gcn_visual_forward.1} parent=0
    #allocation3 [shape = 'u8[2048]{0}', space=vmem, size = 0x800, scoped, tag = 'output window, operand 0, single buffered']
    #allocation4 [shape = 's32[1]{0}', space=sflag, size = 0x4, scoped, tag = 'scoped memory for gcn_visual_forward.1']
    %19 = vsyncpa [#allocation4], 0
    // Predicated region
    $region2: #{gcn_visual_forward.1} parent=1 // pred_check
      _
    $region3: #{gcn_visual_forward.1} parent=1 // pred_check_branch
      %21 = sbr.rel (0) target = $region5
    $region4: #{gcn_visual_forward.1} parent=1 // pred_region
      _
    $region5: #{gcn_visual_forward.1} parent=1 // pred_fallthru
      _
    // Predicated region
    $region6: #{gcn_visual_forward.1} parent=1 // pred_check
      _
    $region7: #{gcn_visual_forward.1} parent=1 // pred_check_branch
      %23 = sbr.rel (0) target = $region9
    $region8: #{gcn_visual_forward.1} parent=1 // pred_region
      _
    $region9: #{gcn_visual_forward.1} parent=1 // pred_fallthru
      _
    // Predicated region
    $region10: #{gcn_visual_forward.1} parent=1 // pred_check
      _
    $region11: #{gcn_visual_forward.1} parent=1 // pred_check_branch
      %25 = sbr.rel (0) target = $region13
    $region12: #{gcn_visual_forward.1} parent=1 // pred_region
      _
    $region13: #{gcn_visual_forward.1} parent=1 // pred_fallthru
      _
    // Predicated region
    $region14: #{gcn_visual_forward.1} parent=1 // pred_check
      _
    $region15: #{gcn_visual_forward.1} parent=1 // pred_check_branch
      %27 = sbr.rel (0) target = $region17
    $region16: #{gcn_visual_forward.1} parent=1 // pred_region
      _
    $region17: #{gcn_visual_forward.1} parent=1 // pred_fallthru
      _
    // Predicated region
    $region18: #{gcn_visual_forward.1} parent=1 // pred_check
      _
    $region19: #{gcn_visual_forward.1} parent=1 // pred_check_branch
      %29 = sbr.rel (0) target = $region21
    $region20: #{gcn_visual_forward.1} parent=1 // pred_region
      _
    $region21: #{gcn_visual_forward.1} parent=1 // pred_fallthru
      _
    // Predicated region
    $region22: #{gcn_visual_forward.1} parent=1 // pred_check
      _
    $region23: #{gcn_visual_forward.1} parent=1 // pred_check_branch
      %31 = sbr.rel (0) target = $region25
    $region24: #{gcn_visual_forward.1} parent=1 // pred_region
      _
    $region25: #{gcn_visual_forward.1} parent=1 // pred_fallthru
      _
    // Predicated region
    $region26: #{gcn_visual_forward.1} parent=1 // pred_check
      _
    $region27: #{gcn_visual_forward.1} parent=1 // pred_check_branch
      %33 = sbr.rel (0) target = $region29
    $region28: #{gcn_visual_forward.1} parent=1 // pred_region
      _
    $region29: #{gcn_visual_forward.1} parent=1 // pred_fallthru
      _
    // Predicated region
    $region30: #{gcn_visual_forward.1} parent=1 // pred_check
      _
    $region31: #{gcn_visual_forward.1} parent=1 // pred_check_branch
      %35 = sbr.rel (0) target = $region33
    $region32: #{gcn_visual_forward.1} parent=1 // pred_region
      _
    $region33: #{gcn_visual_forward.1} parent=1 // pred_fallthru
      _
    // Predicated region
    $region34: #{gcn_visual_forward.1} parent=1 // pred_check
      _
    $region35: #{gcn_visual_forward.1} parent=1 // pred_check_branch
      %37 = sbr.rel (0) target = $region37
    $region36: #{gcn_visual_forward.1} parent=1 // pred_region
      _
    $region37: #{gcn_visual_forward.1} parent=1 // pred_fallthru
      _
    // Predicated region
    $region38: #{gcn_visual_forward.1} parent=1 // pred_check
      _
    $region39: #{gcn_visual_forward.1} parent=1 // pred_check_branch
      %39 = sbr.rel (0) target = $region41
    $region40: #{gcn_visual_forward.1} parent=1 // pred_region
      _
    $region41: #{gcn_visual_forward.1} parent=1 // pred_fallthru
      _
    // Predicated region
    $region42: #{gcn_visual_forward.1} parent=1 // pred_check
      _
    $region43: #{gcn_visual_forward.1} parent=1 // pred_check_branch
      %41 = sbr.rel (0) target = $region45
    $region44: #{gcn_visual_forward.1} parent=1 // pred_region
      _
    $region45: #{gcn_visual_forward.1} parent=1 // pred_fallthru
      _
    // Predicated region
    $region46: #{gcn_visual_forward.1} parent=1 // pred_check
      _
    $region47: #{gcn_visual_forward.1} parent=1 // pred_check_branch
      %43 = sbr.rel (0) target = $region49
    $region48: #{gcn_visual_forward.1} parent=1 // pred_region
      _
    $region49: #{gcn_visual_forward.1} parent=1 // pred_fallthru
      _
    %v44 = vld [vmem:[%s0] sm:$0xff]
    %v45 = vld [vmem:[%s0 + $0x8] sm:$0xff]
    %v46 = vld [vmem:[%s0 + $0x10] sm:$0xff]
    %v47 = vld [vmem:[%s0 + $0x18] sm:$0xff]
    %v48 = vld [vmem:[%s0 + $0x20] sm:$0xff]
    %v49 = vld [vmem:[%s0 + $0x28] sm:$0xff]
    %v50 = vld [vmem:[%s0 + $0x30] sm:$0xff]
    %v51 = vld [vmem:[%s0 + $0x38] sm:$0xff]
    %v52 = vld [vmem:[%s1] sm:$0xff]
    %v53 = vld [vmem:[%s1 + $0x8] sm:$0xff]
    %v54 = vld [vmem:[%s1 + $0x10] sm:$0xff]
    %v55 = vld [vmem:[%s1 + $0x18] sm:$0xff]
    %v56 = vld [vmem:[%s2] sm:$0x1]
    %v58 = vlaneseq
    %v59 = vshrl.u32 %v58, 7
    %v60 = vsub.s32 0, %v59
    %v61 = vrot.slane %v56, %v60
    %vm63 = vcmask 261120
    %v65 = vsel %vm63, %v44, 0
    %v68 = vsel %vm63, %v45, 0
    %v71 = vsel %vm63, %v46, 0
    %v74 = vsel %vm63, %v47, 0
    %v77 = vsel %vm63, %v48, 0
    %v80 = vsel %vm63, %v49, 0
    %v83 = vsel %vm63, %v50, 0
    %v86 = vsel %vm63, %v51, 0
    %88 = vmatprep.subr.mxu0 0.0
    %89 = vmatpush1.msra.mxu0 0.0
    %90 = vmatprep.subr.mxu0 0.0
    %91 = vmatpush1.msra.mxu0 0.0
    %92 = vmatprep.subr.mxu0 0.0
    %93 = vmatpush1.msra.mxu0 0.0
    %94 = vmatprep.subr.mxu0 0.0
    %95 = vmatpush1.msra.mxu0 0.0
    %96 = vmatprep.subr.mxu0 0.0
    %97 = vmatpush1.msra.mxu0 0.0
    %98 = vmatprep.subr.mxu0 0.0
    %99 = vmatpush1.msra.mxu0 0.0
    %100 = vmatprep.subr.mxu0 0.0
    %101 = vmatpush1.msra.mxu0 0.0
    %102 = vmatprep.subr.mxu0 0.0
    %103 = vmatpush1.msra.mxu0 0.0
    %104 = vmatprep.subr.mxu0 0.0
    %105 = vmatpush1.msra.mxu0 0.0
    %106 = vmatprep.subr.mxu0 0.0
    %107 = vmatpush1.msra.mxu0 0.0
    %108 = vmatprep.subr.mxu0 0.0
    %109 = vmatpush1.msra.mxu0 0.0
    %110 = vmatprep.subr.mxu0 0.0
    %111 = vmatpush1.msra.mxu0 0.0
    %112 = vmatprep.subr.mxu0 0.0
    %113 = vmatpush1.msra.mxu0 %v55
    %114 = vmatprep.subr.mxu0 0.0
    %115 = vmatpush1.msra.mxu0 %v54
    %116 = vmatprep.subr.mxu0 0.0
    %117 = vmatpush1.msra.mxu0 %v53
    %118 = vmatprep.subr.mxu0 0.0
    %119 = vmatpush1.msra.mxu0 %v52
    %120 = vmatprep.subr.mxu0 0.0
    %121 = vmatpush2.msra.mxu0 0.0
    %122 = vmatprep.subr.mxu0 0.0
    %123 = vmatpush2.msra.mxu0 0.0
    %124 = vmatprep.subr.mxu0 0.0
    %125 = vmatpush2.msra.mxu0 0.0
    %126 = vmatprep.subr.mxu0 0.0
    %127 = vmatpush2.msra.mxu0 0.0
    %128 = vmatprep.subr.mxu0 0.0
    %129 = vmatpush2.msra.mxu0 0.0
    %130 = vmatprep.subr.mxu0 0.0
    %131 = vmatpush2.msra.mxu0 0.0
    %132 = vmatprep.subr.mxu0 0.0
    %133 = vmatpush2.msra.mxu0 0.0
    %134 = vmatprep.subr.mxu0 0.0
    %135 = vmatpush2.msra.mxu0 0.0
    %136 = vmatprep.subr.mxu0 0.0
    %137 = vmatpush2.msra.mxu0 0.0
    %138 = vmatprep.subr.mxu0 0.0
    %139 = vmatpush2.msra.mxu0 0.0
    %140 = vmatprep.subr.mxu0 0.0
    %141 = vmatpush2.msra.mxu0 0.0
    %142 = vmatprep.subr.mxu0 0.0
    %143 = vmatpush2.msra.mxu0 0.0
    %144 = vmatprep.subr.mxu0 0.0
    %145 = vmatpush2.msra.mxu0 0.0
    %146 = vmatprep.subr.mxu0 0.0
    %147 = vmatpush2.msra.mxu0 0.0
    %148 = vmatprep.subr.mxu0 0.0
    %149 = vmatpush2.msra.mxu0 0.0
    %150 = vmatprep.subr.mxu0 0.0
    %151 = vmatpush2.msra.mxu0 0.0
    %152 = vmatprep.mubr.f32.mxu0 0.0
    %153 = vmatmul.mubr.f32.gmra.mxu0 %v65
    %v154 = vpop.f32.mrf.mxu0
    %v155 = vadd.f32 %v61, %v154
    %v156 = vpop.f32.mrf.mxu0
    %157 = vmatprep.mubr.f32.mxu0 0.0
    %158 = vmatmul.mubr.f32.gmra.mxu0 %v68
    %v159 = vpop.f32.mrf.mxu0
    %v160 = vadd.f32 %v61, %v159
    %v161 = vpop.f32.mrf.mxu0
    %162 = vmatprep.mubr.f32.mxu0 0.0
    %163 = vmatmul.mubr.f32.gmra.mxu0 %v71
    %v164 = vpop.f32.mrf.mxu0
    %v165 = vadd.f32 %v61, %v164
    %v166 = vpop.f32.mrf.mxu0
    %167 = vmatprep.mubr.f32.mxu0 0.0
    %168 = vmatmul.mubr.f32.gmra.mxu0 %v74
    %v169 = vpop.f32.mrf.mxu0
    %v170 = vadd.f32 %v61, %v169
    %v171 = vpop.f32.mrf.mxu0
    %172 = vmatprep.mubr.f32.mxu0 0.0
    %173 = vmatmul.mubr.f32.gmra.mxu0 %v77
    %v174 = vpop.f32.mrf.mxu0
    %v175 = vadd.f32 %v61, %v174
    %v176 = vpop.f32.mrf.mxu0
    %177 = vmatprep.mubr.f32.mxu0 0.0
    %178 = vmatmul.mubr.f32.gmra.mxu0 %v80
    %v179 = vpop.f32.mrf.mxu0
    %v180 = vadd.f32 %v61, %v179
    %v181 = vpop.f32.mrf.mxu0
    %182 = vmatprep.mubr.f32.mxu0 0.0
    %183 = vmatmul.mubr.f32.gmra.mxu0 %v83
    %v184 = vpop.f32.mrf.mxu0
    %v185 = vadd.f32 %v61, %v184
    %v186 = vpop.f32.mrf.mxu0
    %187 = vmatprep.mubr.f32.mxu0 0.0
    %188 = vmatmul.mubr.f32.gmra.mxu0 %v86
    %v189 = vpop.f32.mrf.mxu0
    %v190 = vadd.f32 %v61, %v189
    %v191 = vpop.f32.mrf.mxu0
    %192 = vdwg.mxu0
    %v193 = vmax.f32 %v155, 0.0
    %v194 = vmax.f32 %v160, 0.0
    %v195 = vmax.f32 %v165, 0.0
    %v196 = vmax.f32 %v170, 0.0
    %v197 = vmax.f32 %v175, 0.0
    %v198 = vmax.f32 %v180, 0.0
    %v199 = vmax.f32 %v185, 0.0
    %v200 = vmax.f32 %v190, 0.0
    %v201 = vld [vmem:[%s3] sm:$0xff]
    %v202 = vld [vmem:[%s3 + $0x8] sm:$0xff]
    %v203 = vld [vmem:[%s4] sm:$0x1]
    %v205 = vlaneseq
    %v206 = vshrl.u32 %v205, 7
    %v207 = vsub.s32 0, %v206
    %v208 = vrot.slane %v203, %v207
    %vm210 = vcmask 130048
    %v212 = vsel %vm210, %v193, 0
    %v215 = vsel %vm210, %v194, 0
    %v218 = vsel %vm210, %v195, 0
    %v221 = vsel %vm210, %v196, 0
    %v224 = vsel %vm210, %v197, 0
    %v227 = vsel %vm210, %v198, 0
    %v230 = vsel %vm210, %v199, 0
    %v233 = vsel %vm210, %v200, 0
    %235 = vmatprep.subr.mxu0 0.0
    %236 = vmatpush1.msra.mxu0 0.0
    %237 = vmatprep.subr.mxu0 0.0
    %238 = vmatpush1.msra.mxu0 0.0
    %239 = vmatprep.subr.mxu0 0.0
    %240 = vmatpush1.msra.mxu0 0.0
    %241 = vmatprep.subr.mxu0 0.0
    %242 = vmatpush1.msra.mxu0 0.0
    %243 = vmatprep.subr.mxu0 0.0
    %244 = vmatpush1.msra.mxu0 0.0
    %245 = vmatprep.subr.mxu0 0.0
    %246 = vmatpush1.msra.mxu0 0.0
    %247 = vmatprep.subr.mxu0 0.0
    %248 = vmatpush1.msra.mxu0 0.0
    %249 = vmatprep.subr.mxu0 0.0
    %250 = vmatpush1.msra.mxu0 0.0
    %251 = vmatprep.subr.mxu0 0.0
    %252 = vmatpush1.msra.mxu0 0.0
    %253 = vmatprep.subr.mxu0 0.0
    %254 = vmatpush1.msra.mxu0 0.0
    %255 = vmatprep.subr.mxu0 0.0
    %256 = vmatpush1.msra.mxu0 0.0
    %257 = vmatprep.subr.mxu0 0.0
    %258 = vmatpush1.msra.mxu0 0.0
    %259 = vmatprep.subr.mxu0 0.0
    %260 = vmatpush1.msra.mxu0 0.0
    %261 = vmatprep.subr.mxu0 0.0
    %262 = vmatpush1.msra.mxu0 0.0
    %263 = vmatprep.subr.mxu0 0.0
    %264 = vmatpush1.msra.mxu0 %v202
    %265 = vmatprep.subr.mxu0 0.0
    %266 = vmatpush1.msra.mxu0 %v201
    %267 = vmatprep.subr.mxu0 0.0
    %268 = vmatpush2.msra.mxu0 0.0
    %269 = vmatprep.subr.mxu0 0.0
    %270 = vmatpush2.msra.mxu0 0.0
    %271 = vmatprep.subr.mxu0 0.0
    %272 = vmatpush2.msra.mxu0 0.0
    %273 = vmatprep.subr.mxu0 0.0
    %274 = vmatpush2.msra.mxu0 0.0
    %275 = vmatprep.subr.mxu0 0.0
    %276 = vmatpush2.msra.mxu0 0.0
    %277 = vmatprep.subr.mxu0 0.0
    %278 = vmatpush2.msra.mxu0 0.0
    %279 = vmatprep.subr.mxu0 0.0
    %280 = vmatpush2.msra.mxu0 0.0
    %281 = vmatprep.subr.mxu0 0.0
    %282 = vmatpush2.msra.mxu0 0.0
    %283 = vmatprep.subr.mxu0 0.0
    %284 = vmatpush2.msra.mxu0 0.0
    %285 = vmatprep.subr.mxu0 0.0
    %286 = vmatpush2.msra.mxu0 0.0
    %287 = vmatprep.subr.mxu0 0.0
    %288 = vmatpush2.msra.mxu0 0.0
    %289 = vmatprep.subr.mxu0 0.0
    %290 = vmatpush2.msra.mxu0 0.0
    %291 = vmatprep.subr.mxu0 0.0
    %292 = vmatpush2.msra.mxu0 0.0
    %293 = vmatprep.subr.mxu0 0.0
    %294 = vmatpush2.msra.mxu0 0.0
    %295 = vmatprep.subr.mxu0 0.0
    %296 = vmatpush2.msra.mxu0 0.0
    %297 = vmatprep.subr.mxu0 0.0
    %298 = vmatpush2.msra.mxu0 0.0
    %299 = vmatprep.mubr.f32.mxu0 0.0
    %300 = vmatmul.mubr.f32.gmra.mxu0 %v212
    %v301 = vpop.f32.mrf.mxu0
    %v302 = vadd.f32 %v208, %v301
    %v303 = vpop.f32.mrf.mxu0
    %304 = vmatprep.mubr.f32.mxu0 0.0
    %305 = vmatmul.mubr.f32.gmra.mxu0 %v215
    %v306 = vpop.f32.mrf.mxu0
    %v307 = vadd.f32 %v208, %v306
    %v308 = vpop.f32.mrf.mxu0
    %309 = vmatprep.mubr.f32.mxu0 0.0
    %310 = vmatmul.mubr.f32.gmra.mxu0 %v218
    %v311 = vpop.f32.mrf.mxu0
    %v312 = vadd.f32 %v208, %v311
    %v313 = vpop.f32.mrf.mxu0
    %314 = vmatprep.mubr.f32.mxu0 0.0
    %315 = vmatmul.mubr.f32.gmra.mxu0 %v221
    %v316 = vpop.f32.mrf.mxu0
    %v317 = vadd.f32 %v208, %v316
    %v318 = vpop.f32.mrf.mxu0
    %319 = vmatprep.mubr.f32.mxu0 0.0
    %320 = vmatmul.mubr.f32.gmra.mxu0 %v224
    %v321 = vpop.f32.mrf.mxu0
    %v322 = vadd.f32 %v208, %v321
    %v323 = vpop.f32.mrf.mxu0
    %324 = vmatprep.mubr.f32.mxu0 0.0
    %325 = vmatmul.mubr.f32.gmra.mxu0 %v227
    %v326 = vpop.f32.mrf.mxu0
    %v327 = vadd.f32 %v208, %v326
    %v328 = vpop.f32.mrf.mxu0
    %329 = vmatprep.mubr.f32.mxu0 0.0
    %330 = vmatmul.mubr.f32.gmra.mxu0 %v230
    %v331 = vpop.f32.mrf.mxu0
    %v332 = vadd.f32 %v208, %v331
    %v333 = vpop.f32.mrf.mxu0
    %334 = vmatprep.mubr.f32.mxu0 0.0
    %335 = vmatmul.mubr.f32.gmra.mxu0 %v233
    %v336 = vpop.f32.mrf.mxu0
    %v337 = vadd.f32 %v208, %v336
    %v338 = vpop.f32.mrf.mxu0
    %339 = vdwg.mxu0
    %v340 = vmax.f32 %v302, 0.0
    %v341 = vmax.f32 %v307, 0.0
    %v342 = vmax.f32 %v312, 0.0
    %v343 = vmax.f32 %v317, 0.0
    %v344 = vmax.f32 %v322, 0.0
    %v345 = vmax.f32 %v327, 0.0
    %v346 = vmax.f32 %v332, 0.0
    %v347 = vmax.f32 %v337, 0.0
    %v348 = vld [vmem:[%s5] sm:$0xff]
    %v349 = vld [vmem:[%s5 + $0x8] sm:$0xff]
    %v350 = vld [vmem:[%s5 + $0x10] sm:$0xff]
    %v351 = vld [vmem:[%s5 + $0x18] sm:$0xff]
    %v352 = vld [vmem:[%s5 + $0x20] sm:$0xff]
    %v353 = vld [vmem:[%s5 + $0x28] sm:$0xff]
    %v354 = vld [vmem:[%s5 + $0x30] sm:$0xff]
    %v355 = vld [vmem:[%s5 + $0x38] sm:$0xff]
    %v356 = vmul.f32 %v340, %v348
    %v357 = vmul.f32 %v341, %v349
    %v358 = vmul.f32 %v342, %v350
    %v359 = vmul.f32 %v343, %v351
    %v360 = vmul.f32 %v344, %v352
    %v361 = vmul.f32 %v345, %v353
    %v362 = vmul.f32 %v346, %v354
    %v363 = vmul.f32 %v347, %v355
    %vm364 = vcmask 64512
    %v365 = vsel %vm364, %v356, 0.0
    %366 = vadd.xlane.f32.xlu0 %v365
    %v367 = vpop.xlane.xlu0 %366
    %v368 = vsel %vm364, %v357, 0.0
    %369 = vadd.xlane.f32.xlu0 %v368
    %v370 = vpop.xlane.xlu0 %369
    %v371 = vsel %vm364, %v358, 0.0
    %372 = vadd.xlane.f32.xlu0 %v371
    %v373 = vpop.xlane.xlu0 %372
    %v374 = vsel %vm364, %v359, 0.0
    %375 = vadd.xlane.f32.xlu0 %v374
    %v376 = vpop.xlane.xlu0 %375
    %v377 = vsel %vm364, %v360, 0.0
    %378 = vadd.xlane.f32.xlu0 %v377
    %v379 = vpop.xlane.xlu0 %378
    %v380 = vsel %vm364, %v361, 0.0
    %381 = vadd.xlane.f32.xlu0 %v380
    %v382 = vpop.xlane.xlu0 %381
    %v383 = vsel %vm364, %v362, 0.0
    %384 = vadd.xlane.f32.xlu0 %v383
    %v385 = vpop.xlane.xlu0 %384
    %v386 = vsel %vm364, %v363, 0.0
    %387 = vadd.xlane.f32.xlu0 %v386
    %v388 = vpop.xlane.xlu0 %387
    %v389 = vld [vmem:[%s6] sm:$0xf]
    %vm390 = vcmask 523264
    %v392 = vsel %vm390, %v389, 0
    %394 = vmatprep.subr.mxu0 0.0
    %395 = vmatpush1.msra.mxu0 0.0
    %396 = vmatprep.subr.mxu0 0.0
    %397 = vmatpush1.msra.mxu0 0.0
    %398 = vmatprep.subr.mxu0 0.0
    %399 = vmatpush1.msra.mxu0 0.0
    %400 = vmatprep.subr.mxu0 0.0
    %401 = vmatpush1.msra.mxu0 0.0
    %402 = vmatprep.subr.mxu0 0.0
    %403 = vmatpush1.msra.mxu0 0.0
    %404 = vmatprep.subr.mxu0 0.0
    %405 = vmatpush1.msra.mxu0 0.0
    %406 = vmatprep.subr.mxu0 0.0
    %407 = vmatpush1.msra.mxu0 0.0
    %408 = vmatprep.subr.mxu0 0.0
    %409 = vmatpush1.msra.mxu0 0.0
    %410 = vmatprep.subr.mxu0 0.0
    %411 = vmatpush1.msra.mxu0 %v388
    %412 = vmatprep.subr.mxu0 0.0
    %413 = vmatpush1.msra.mxu0 %v385
    %414 = vmatprep.subr.mxu0 0.0
    %415 = vmatpush1.msra.mxu0 %v382
    %416 = vmatprep.subr.mxu0 0.0
    %417 = vmatpush1.msra.mxu0 %v379
    %418 = vmatprep.subr.mxu0 0.0
    %419 = vmatpush1.msra.mxu0 %v376
    %420 = vmatprep.subr.mxu0 0.0
    %421 = vmatpush1.msra.mxu0 %v373
    %422 = vmatprep.subr.mxu0 0.0
    %423 = vmatpush1.msra.mxu0 %v370
    %424 = vmatprep.subr.mxu0 0.0
    %425 = vmatpush1.msra.mxu0 %v367
    %426 = vmatprep.subr.mxu0 0.0
    %427 = vmatpush2.msra.mxu0 0.0
    %428 = vmatprep.subr.mxu0 0.0
    %429 = vmatpush2.msra.mxu0 0.0
    %430 = vmatprep.subr.mxu0 0.0
    %431 = vmatpush2.msra.mxu0 0.0
    %432 = vmatprep.subr.mxu0 0.0
    %433 = vmatpush2.msra.mxu0 0.0
    %434 = vmatprep.subr.mxu0 0.0
    %435 = vmatpush2.msra.mxu0 0.0
    %436 = vmatprep.subr.mxu0 0.0
    %437 = vmatpush2.msra.mxu0 0.0
    %438 = vmatprep.subr.mxu0 0.0
    %439 = vmatpush2.msra.mxu0 0.0
    %440 = vmatprep.subr.mxu0 0.0
    %441 = vmatpush2.msra.mxu0 0.0
    %442 = vmatprep.subr.mxu0 0.0
    %443 = vmatpush2.msra.mxu0 0.0
    %444 = vmatprep.subr.mxu0 0.0
    %445 = vmatpush2.msra.mxu0 0.0
    %446 = vmatprep.subr.mxu0 0.0
    %447 = vmatpush2.msra.mxu0 0.0
    %448 = vmatprep.subr.mxu0 0.0
    %449 = vmatpush2.msra.mxu0 0.0
    %450 = vmatprep.subr.mxu0 0.0
    %451 = vmatpush2.msra.mxu0 0.0
    %452 = vmatprep.subr.mxu0 0.0
    %453 = vmatpush2.msra.mxu0 0.0
    %454 = vmatprep.subr.mxu0 0.0
    %455 = vmatpush2.msra.mxu0 0.0
    %456 = vmatprep.subr.mxu0 0.0
    %457 = vmatpush2.msra.mxu0 0.0
    %458 = vmatprep.mubr.f32.mxu0 0.0
    %459 = vmatmul.mubr.f32.gmra.mxu0 %v392
    %v460 = vpop.f32.mrf.mxu0
    %v461 = vadd.f32 0.0, %v460
    %v462 = vpop.f32.mrf.mxu0
    %463 = vdwg.mxu0
    %v464 = vld [vmem:[%s7] sm:$0x1]
    %466 = vset.pattern.permute.xlu0 0
    %467 = vperm.xlu0 %466, %v461
    %v468 = vpop.permute.xlu0 %467
    %v471 = vlaneseq
    %v472 = vshrl.u32 %v471, 7
    %v473 = vsub.s32 0, %v472
    %v474 = vrot.slane %v464, %v473
    %v476 = vadd.f32 %v468, %v474
    %v477 = vld [vmem:[%s8] sm:$0xff]
    %v478 = vld [vmem:[%s8 + $0x8] sm:$0xff]
    %v479 = vld [vmem:[#allocation2] sm:$0x1]
    %v481 = vlaneseq
    %v482 = vshrl.u32 %v481, 7
    %v483 = vsub.s32 0, %v482
    %v484 = vrot.slane %v479, %v483
    %485 = vset.pattern.permute.xlu0 0
    %486 = vperm.xlu0 %485, %v484
    %v487 = vpop.permute.xlu0 %486
    %v490 = vsel %vm210, %v476, 0
    %492 = vmatprep.subr.mxu0 0.0
    %493 = vmatpush1.msra.mxu0 0.0
    %494 = vmatprep.subr.mxu0 0.0
    %495 = vmatpush1.msra.mxu0 0.0
    %496 = vmatprep.subr.mxu0 0.0
    %497 = vmatpush1.msra.mxu0 0.0
    %498 = vmatprep.subr.mxu0 0.0
    %499 = vmatpush1.msra.mxu0 0.0
    %500 = vmatprep.subr.mxu0 0.0
    %501 = vmatpush1.msra.mxu0 0.0
    %502 = vmatprep.subr.mxu0 0.0
    %503 = vmatpush1.msra.mxu0 0.0
    %504 = vmatprep.subr.mxu0 0.0
    %505 = vmatpush1.msra.mxu0 0.0
    %506 = vmatprep.subr.mxu0 0.0
    %507 = vmatpush1.msra.mxu0 0.0
    %508 = vmatprep.subr.mxu0 0.0
    %509 = vmatpush1.msra.mxu0 0.0
    %510 = vmatprep.subr.mxu0 0.0
    %511 = vmatpush1.msra.mxu0 0.0
    %512 = vmatprep.subr.mxu0 0.0
    %513 = vmatpush1.msra.mxu0 0.0
    %514 = vmatprep.subr.mxu0 0.0
    %515 = vmatpush1.msra.mxu0 0.0
    %516 = vmatprep.subr.mxu0 0.0
    %517 = vmatpush1.msra.mxu0 0.0
    %518 = vmatprep.subr.mxu0 0.0
    %519 = vmatpush1.msra.mxu0 0.0
    %520 = vmatprep.subr.mxu0 0.0
    %521 = vmatpush1.msra.mxu0 %v478
    %522 = vmatprep.subr.mxu0 0.0
    %523 = vmatpush1.msra.mxu0 %v477
    %524 = vmatprep.subr.mxu0 0.0
    %525 = vmatpush2.msra.mxu0 0.0
    %526 = vmatprep.subr.mxu0 0.0
    %527 = vmatpush2.msra.mxu0 0.0
    %528 = vmatprep.subr.mxu0 0.0
    %529 = vmatpush2.msra.mxu0 0.0
    %530 = vmatprep.subr.mxu0 0.0
    %531 = vmatpush2.msra.mxu0 0.0
    %532 = vmatprep.subr.mxu0 0.0
    %533 = vmatpush2.msra.mxu0 0.0
    %534 = vmatprep.subr.mxu0 0.0
    %535 = vmatpush2.msra.mxu0 0.0
    %536 = vmatprep.subr.mxu0 0.0
    %537 = vmatpush2.msra.mxu0 0.0
    %538 = vmatprep.subr.mxu0 0.0
    %539 = vmatpush2.msra.mxu0 0.0
    %540 = vmatprep.subr.mxu0 0.0
    %541 = vmatpush2.msra.mxu0 0.0
    %542 = vmatprep.subr.mxu0 0.0
    %543 = vmatpush2.msra.mxu0 0.0
    %544 = vmatprep.subr.mxu0 0.0
    %545 = vmatpush2.msra.mxu0 0.0
    %546 = vmatprep.subr.mxu0 0.0
    %547 = vmatpush2.msra.mxu0 0.0
    %548 = vmatprep.subr.mxu0 0.0
    %549 = vmatpush2.msra.mxu0 0.0
    %550 = vmatprep.subr.mxu0 0.0
    %551 = vmatpush2.msra.mxu0 0.0
    %552 = vmatprep.subr.mxu0 0.0
    %553 = vmatpush2.msra.mxu0 0.0
    %554 = vmatprep.subr.mxu0 0.0
    %555 = vmatpush2.msra.mxu0 0.0
    %556 = vmatprep.mubr.f32.mxu0 0.0
    %557 = vmatmul.mubr.f32.gmra.mxu0 %v490
    %v558 = vpop.f32.mrf.mxu0
    %v559 = vadd.f32 %v487, %v558
    %v560 = vpop.f32.mrf.mxu0
    %561 = vdwg.mxu0
    %v562 = vmax.f32 %v559, 0.0
    %v563 = vld [vmem:[%s10] sm:$0xff]
    %v564 = vld [vmem:[%s10 + $0x8] sm:$0xff]
    %v565 = vld [vmem:[%s11] sm:$0x1]
    %v567 = vlaneseq
    %v568 = vshrl.u32 %v567, 7
    %v569 = vsub.s32 0, %v568
    %v570 = vrot.slane %v565, %v569
    %v573 = vsel %vm210, %v562, 0
    %575 = vmatprep.subr.mxu0 0.0
    %576 = vmatpush1.msra.mxu0 0.0
    %577 = vmatprep.subr.mxu0 0.0
    %578 = vmatpush1.msra.mxu0 0.0
    %579 = vmatprep.subr.mxu0 0.0
    %580 = vmatpush1.msra.mxu0 0.0
    %581 = vmatprep.subr.mxu0 0.0
    %582 = vmatpush1.msra.mxu0 0.0
    %583 = vmatprep.subr.mxu0 0.0
    %584 = vmatpush1.msra.mxu0 0.0
    %585 = vmatprep.subr.mxu0 0.0
    %586 = vmatpush1.msra.mxu0 0.0
    %587 = vmatprep.subr.mxu0 0.0
    %588 = vmatpush1.msra.mxu0 0.0
    %589 = vmatprep.subr.mxu0 0.0
    %590 = vmatpush1.msra.mxu0 0.0
    %591 = vmatprep.subr.mxu0 0.0
    %592 = vmatpush1.msra.mxu0 0.0
    %593 = vmatprep.subr.mxu0 0.0
    %594 = vmatpush1.msra.mxu0 0.0
    %595 = vmatprep.subr.mxu0 0.0
    %596 = vmatpush1.msra.mxu0 0.0
    %597 = vmatprep.subr.mxu0 0.0
    %598 = vmatpush1.msra.mxu0 0.0
    %599 = vmatprep.subr.mxu0 0.0
    %600 = vmatpush1.msra.mxu0 0.0
    %601 = vmatprep.subr.mxu0 0.0
    %602 = vmatpush1.msra.mxu0 0.0
    %603 = vmatprep.subr.mxu0 0.0
    %604 = vmatpush1.msra.mxu0 %v564
    %605 = vmatprep.subr.mxu0 0.0
    %606 = vmatpush1.msra.mxu0 %v563
    %607 = vmatprep.subr.mxu0 0.0
    %608 = vmatpush2.msra.mxu0 0.0
    %609 = vmatprep.subr.mxu0 0.0
    %610 = vmatpush2.msra.mxu0 0.0
    %611 = vmatprep.subr.mxu0 0.0
    %612 = vmatpush2.msra.mxu0 0.0
    %613 = vmatprep.subr.mxu0 0.0
    %614 = vmatpush2.msra.mxu0 0.0
    %615 = vmatprep.subr.mxu0 0.0
    %616 = vmatpush2.msra.mxu0 0.0
    %617 = vmatprep.subr.mxu0 0.0
    %618 = vmatpush2.msra.mxu0 0.0
    %619 = vmatprep.subr.mxu0 0.0
    %620 = vmatpush2.msra.mxu0 0.0
    %621 = vmatprep.subr.mxu0 0.0
    %622 = vmatpush2.msra.mxu0 0.0
    %623 = vmatprep.subr.mxu0 0.0
    %624 = vmatpush2.msra.mxu0 0.0
    %625 = vmatprep.subr.mxu0 0.0
    %626 = vmatpush2.msra.mxu0 0.0
    %627 = vmatprep.subr.mxu0 0.0
    %628 = vmatpush2.msra.mxu0 0.0
    %629 = vmatprep.subr.mxu0 0.0
    %630 = vmatpush2.msra.mxu0 0.0
    %631 = vmatprep.subr.mxu0 0.0
    %632 = vmatpush2.msra.mxu0 0.0
    %633 = vmatprep.subr.mxu0 0.0
    %634 = vmatpush2.msra.mxu0 0.0
    %635 = vmatprep.subr.mxu0 0.0
    %636 = vmatpush2.msra.mxu0 0.0
    %637 = vmatprep.subr.mxu0 0.0
    %638 = vmatpush2.msra.mxu0 0.0
    %639 = vmatprep.mubr.f32.mxu0 0.0
    %640 = vmatmul.mubr.f32.gmra.mxu0 %v573
    %v641 = vpop.f32.mrf.mxu0
    %v642 = vadd.f32 %v570, %v641
    %v643 = vpop.f32.mrf.mxu0
    %644 = vdwg.mxu0
    %vm645 = vcmask 60416
    %646 = vst.msk [vmem:[#allocation3] sm:$0xf] %vm645, %v642
    // Predicated region
    $region50: #{gcn_visual_forward.1} parent=1 // pred_check
      _
    $region51: #{gcn_visual_forward.1} parent=1 // pred_check_branch
      %648 = sbr.rel (0) target = $region53
    $region52: #{gcn_visual_forward.1} parent=1 // pred_region
      %s650 = ssub.s32 64, 64
      %651 = vsyncadd [#allocation4], %s650
      %s653 = sshll.u32 [#allocation3], 4
      %s654 = int_to_ptr.vmem [resolvable:$true] %s653
      %656 = dma.vmem_to_hbm [thread:$0]  %s654, 64, %s12, [#allocation4]
    $region53: #{gcn_visual_forward.1} parent=1 // pred_fallthru
      _
    // Predicated region
    $region54: #{gcn_visual_forward.1} parent=1 // pred_check
      _
    $region55: #{gcn_visual_forward.1} parent=1 // pred_check_branch
      %658 = sbr.rel (0) target = $region57
    $region56: #{gcn_visual_forward.1} parent=1 // pred_region
      %659 = dma.done [#allocation4], 64
    $region57: #{gcn_visual_forward.1} parent=1 // pred_fallthru
      _
    %660 = vsyncpa [#allocation4], 1

</llo_original>
